<compile_context>
chip_gen: v5e
topology: v5e:2x2
jax: 0.10.0
libtpu: 0.0.40
codegen_flags: <defaults>
</compile_context>

<pallas_src>
import jax
import jax.numpy as jnp
from jax.experimental import pallas as pl
from jax.experimental.pallas import tpu as pltpu

LANE = 128           # vreg lane width
SUBLANE = 8          # f32 sublanes per vreg
MAX_TILE_ROWS = 2048  # (2048, 128) f32 input tile = 1 MiB; output tile = 2 MiB


def _round_up(a: int, b: int) -> int:
    return ((a + b - 1) // b) * b


def linear12_kernel(w_ref, b_ref, x_ref, o_ref):
    """nn.Linear(1, 2) as a lane-dense VPU broadcast FMA.

    w_ref: SMEM (2,)         f32, flattened PyTorch weight (out, in) = (2, 1).
    b_ref: SMEM (2,)         f32.
    x_ref: VMEM (TR, 128)    f32, batch laid out lane-dense (128 elems / row).
    o_ref: VMEM (2, TR, 128) f32, planar per-output-feature slabs.
    """
    x = x_ref[...]                              # (TR, 128), full vregs
    o_ref[0] = x * w_ref[0] + b_ref[0]          # out feature 0: unmasked full-vreg stores
    o_ref[1] = x * w_ref[1] + b_ref[1]          # out feature 1


def _pallas_linear12(x, weight, bias, *, max_tile_rows=MAX_TILE_ROWS):
    """x: (B, 1) f32; weight: (2, 1) f32 (PyTorch (out,in)); bias: (2,) f32."""
    B, _ = x.shape
    out_f = weight.shape[0]

    # Lane-dense relayout: batch on the lane axis. Pad B so the slab is
    # (R_pad, 128) with R_pad a multiple of the row tile (no partial blocks,
    # so the (8,128) block constraint is always satisfied).
    R = pl.cdiv(B, LANE)
    TR = min(max_tile_rows, _round_up(R, SUBLANE))
    R_pad = _round_up(R, TR)
    B_pad = R_pad * LANE

    x_flat = x.reshape(B)
    if B_pad != B:
        x_flat = jnp.pad(x_flat, (0, B_pad - B))
    x_lanes = x_flat.reshape(R_pad, LANE)

    grid = (R_pad // TR,)

    out_planar = pl.pallas_call(
        linear12_kernel,
        out_shape=jax.ShapeDtypeStruct((out_f, R_pad, LANE), x.dtype),
        grid=grid,
        in_specs=[
            # Tiny params live flat in SMEM: no VMEM tile padding, no extra DMAs.
            pl.BlockSpec(memory_space=pltpu.MemorySpace.SMEM),   # weight (2,)
            pl.BlockSpec(memory_space=pltpu.MemorySpace.SMEM),   # bias   (2,)
            pl.BlockSpec((TR, LANE), lambda i: (i, 0)),          # x tile (lane-dense)
        ],
        out_specs=pl.BlockSpec((out_f, TR, LANE), lambda i: (0, i, 0)),
        compiler_params=pltpu.CompilerParams(
            dimension_semantics=("parallel",),   # shard batch tiles across TCs (v7x)
        ),
    )(weight.reshape(out_f), bias, x_lanes)

    # Wrapper-side layout plumbing back to the module's (B, 2) output
    # (only 8 bytes/row of data; negligible).
    return out_planar.reshape(out_f, B_pad).T[:B]


def dummy_model_forward(x, weight, bias, *, min_pallas_batch=1024):
    """DummyModel.forward: y = x @ W^T + b with x (B,1), W (2,1), b (2,)."""
    B, _ = x.shape
    out_f = weight.shape[0]
    if B < min_pallas_batch:
        # Tiny problem: a single fused XLA elementwise op beats a pallas_call launch.
        return x * weight.reshape(out_f)[None, :] + bias[None, :]
    return _pallas_linear12(x, weight, bias)


if __name__ == "__main__":
    key = jax.random.PRNGKey(0)
    k_x, k_w, k_b = jax.random.split(key, 3)

    in_f, out_f = 1, 2
    B = 3000  # non-multiple of 128 -> exercises padded last lane row

    x = jax.random.normal(k_x, (B, in_f), dtype=jnp.float32)

    # Deterministic init mimicking nn.Linear default: U(-1/sqrt(in_f), 1/sqrt(in_f)),
    # kept in PyTorch (out, in) layout.
    bound = 1.0 / jnp.sqrt(jnp.float32(in_f))
    weight = jax.random.uniform(k_w, (out_f, in_f), jnp.float32, -bound, bound)
    bias = jax.random.uniform(k_b, (out_f,), jnp.float32, -bound, bound)

    # Run the Pallas kernel path directly and block on it.
    y = _pallas_linear12(x, weight, bias)
    jax.block_until_ready(y)

    # Cross-check against plain JAX reference.
    y_ref = x @ weight.T + bias
    assert y.shape == (B, out_f)
    assert jnp.allclose(y, y_ref, atol=1e-5, rtol=1e-5), "pallas path mismatch vs reference"

    # Also verify the small-batch fast-path dispatcher.
    y_small = dummy_model_forward(x[:8], weight, bias)
    assert jnp.allclose(y_small, y_ref[:8], atol=1e-5, rtol=1e-5), "jnp fast path mismatch"

    print("KERNEL_OK")
</pallas_src>

<mosaic_0001>
module attributes {stable_mosaic.version = 11 : i64} {
  func.func @linear12_kernel(%arg0: i32, %arg1: memref<2xf32, #tpu.memory_space<smem>>, %arg2: memref<2xf32, #tpu.memory_space<smem>>, %arg3: memref<24x128xf32, #tpu.memory_space<vmem>>, %arg4: memref<2x24x128xf32, #tpu.memory_space<vmem>>) attributes {dimension_semantics = [#tpu.dimension_semantics<parallel>], iteration_bounds = array<i64: 1>, scalar_prefetch = 0 : i64, scratch_operands = 0 : i64, tpu.core_type = #tpu.core_type<tc>, window_params = [{transform_indices = @transform_0, window_bounds = array<i64: 2>}, {transform_indices = @transform_1, window_bounds = array<i64: 2>}, {transform_indices = @transform_2, window_bounds = array<i64: 24, 128>}, {transform_indices = @transform_3, window_bounds = array<i64: 2, 24, 128>}]} {
    %c0 = arith.constant 0 : index
    %c0_0 = arith.constant 0 : index
    %0 = vector.load %arg3[%c0, %c0_0] : memref<24x128xf32, #tpu.memory_space<vmem>>, vector<24x128xf32>
    %c0_1 = arith.constant 0 : index
    %1 = memref.load %arg1[%c0_1] : memref<2xf32, #tpu.memory_space<smem>>
    %2 = vector.broadcast %1 : f32 to vector<24x128xf32>
    %3 = arith.mulf %0, %2 : vector<24x128xf32>
    %c0_2 = arith.constant 0 : index
    %4 = memref.load %arg2[%c0_2] : memref<2xf32, #tpu.memory_space<smem>>
    %5 = vector.broadcast %4 : f32 to vector<24x128xf32>
    %6 = arith.addf %3, %5 : vector<24x128xf32>
    %c0_3 = arith.constant 0 : index
    %c0_4 = arith.constant 0 : index
    %c0_5 = arith.constant 0 : index
    %7 = vector.load %arg4[%c0_3, %c0_4, %c0_5] : memref<2x24x128xf32, #tpu.memory_space<vmem>>, vector<1x24x128xf32>
    %8 = vector.shape_cast %7 : vector<1x24x128xf32> to vector<24x128xf32>
    %9 = vector.shape_cast %6 : vector<24x128xf32> to vector<1x24x128xf32>
    tpu.vector_store %arg4[%c0_3, %c0_4, %c0_5], %9 {strides = array<i32>} : memref<2x24x128xf32, #tpu.memory_space<vmem>>, vector<1x24x128xf32>,
    %c1 = arith.constant 1 : index
    %10 = memref.load %arg1[%c1] : memref<2xf32, #tpu.memory_space<smem>>
    %11 = vector.broadcast %10 : f32 to vector<24x128xf32>
    %12 = arith.mulf %0, %11 : vector<24x128xf32>
    %c1_6 = arith.constant 1 : index
    %13 = memref.load %arg2[%c1_6] : memref<2xf32, #tpu.memory_space<smem>>
    %14 = vector.broadcast %13 : f32 to vector<24x128xf32>
    %15 = arith.addf %12, %14 : vector<24x128xf32>
    %c1_7 = arith.constant 1 : index
    %c0_8 = arith.constant 0 : index
    %c0_9 = arith.constant 0 : index
    %16 = vector.load %arg4[%c1_7, %c0_8, %c0_9] : memref<2x24x128xf32, #tpu.memory_space<vmem>>, vector<1x24x128xf32>
    %17 = vector.shape_cast %16 : vector<1x24x128xf32> to vector<24x128xf32>
    %18 = vector.shape_cast %15 : vector<24x128xf32> to vector<1x24x128xf32>
    tpu.vector_store %arg4[%c1_7, %c0_8, %c0_9], %18 {strides = array<i32>} : memref<2x24x128xf32, #tpu.memory_space<vmem>>, vector<1x24x128xf32>,
    return
  }
  func.func @transform_0(%arg0: i32) -> i32 {
    %c0_i32 = arith.constant 0 : i32
    %c0_i32_0 = arith.constant 0 : i32
    return %c0_i32 : i32
  }
  func.func @transform_1(%arg0: i32) -> i32 {
    %c0_i32 = arith.constant 0 : i32
    %c0_i32_0 = arith.constant 0 : i32
    return %c0_i32 : i32
  }
  func.func @transform_2(%arg0: i32) -> (i32, i32) {
    %c0_i32 = arith.constant 0 : i32
    %c0_i32_0 = arith.constant 0 : i32
    return %arg0, %c0_i32 : i32, i32
  }
  func.func @transform_3(%arg0: i32) -> (i32, i32, i32) {
    %c0_i32 = arith.constant 0 : i32
    %c0_i32_0 = arith.constant 0 : i32
    %c0_i32_1 = arith.constant 0 : i32
    return %c0_i32, %arg0, %c0_i32_0 : i32, i32, i32
  }
}

</mosaic_0001>

<llo_original>
// kernel: tpu_custom_call.1
$region0: #{tpu_custom_call.1}
  #allocation0 [shape = 'u32[]', space=smem, size = 0x4, offset = 0x4, fixed_abs, tag = 'smem constant byte address 0x4 - core index']
  #allocation1 [shape = 'u32[72,128]{1,0:T(1,128)}', space=vmem, size = 0x9000, scoped, tag = 'internal scratch']
  %s0 = inlined_call_operand.hbm [shape: f32[2], index: 0, kind: input, shape index: {}]
  %s1 = inlined_call_operand.hbm [shape: f32[2], index: 1, kind: input, shape index: {}]
  %s2 = inlined_call_operand.hbm [shape: f32[24,128], index: 2, kind: input, shape index: {}]
  %s3 = inlined_call_operand.hbm [shape: f32[2,24,128], index: 3, kind: output, shape index: {}]
  %s4 = sld [smem:[#allocation0]]
  $region34: #{tpu_custom_call.1} parent=0
    _
  %s6 = ssub.s32 1, %s4
  %s7 = scalar_select 0, %s6, %s4
  $region1: #{tpu_custom_call.1} parent=0
    #allocation2 [shape = 'u8[512]{0}', space=smem, size = 0x200, scoped, tag = 'input window, operand 0, single buffered']
    #allocation3 [shape = 's32[1]{0}', space=sflag, size = 0x4, scoped, tag = 'scoped memory for tpu_custom_call.1']
    #allocation4 [shape = 's32[1]{0}', space=sflag, size = 0x4, scoped, tag = 'scoped memory for tpu_custom_call.1']
    #allocation5 [shape = 's32[1]{0}', space=sflag, size = 0x4, scoped, tag = 'scoped memory for tpu_custom_call.1']
    #allocation6 [shape = 'u8[512]{0}', space=smem, size = 0x200, scoped, tag = 'input window, operand 1, single buffered']
    #allocation7 [shape = 's32[1]{0}', space=sflag, size = 0x4, scoped, tag = 'scoped memory for tpu_custom_call.1']
    #allocation8 [shape = 'u8[12288]{0}', space=vmem, size = 0x3000, scoped, tag = 'input window, operand 2, single buffered']
    #allocation9 [shape = 'u8[24576]{0}', space=vmem, size = 0x6000, scoped, tag = 'output window, operand 0, single buffered']
    %8 = vsyncpa [#allocation5], 0
    %9 = vsyncpa [#allocation7], 0
    %10 = vsyncpa [#allocation3], 0
    %11 = vsyncpa [#allocation4], 0
    // Predicated region
    $region2: #{tpu_custom_call.1} parent=1 // pred_check
      _
    $region3: #{tpu_custom_call.1} parent=1 // pred_check_branch
      %13 = sbr.rel (0) target = $region5
    $region4: #{tpu_custom_call.1} parent=1 // pred_region
      %15 = vsyncadd [#allocation5], 0
      %s17 = sshll.u32 %s0, 4
      %s18 = int_to_ptr.hbm [resolvable:$true] %s17
      %20 = dma.hbm_to_smem %s18, 16, [#allocation2], [#allocation5]
    $region5: #{tpu_custom_call.1} parent=1 // pred_fallthru
      _
    // Predicated region
    $region6: #{tpu_custom_call.1} parent=1 // pred_check
      _
    $region7: #{tpu_custom_call.1} parent=1 // pred_check_branch
      %22 = sbr.rel (0) target = $region9
    $region8: #{tpu_custom_call.1} parent=1 // pred_region
      %24 = vsyncadd [#allocation7], 0
      %s26 = sshll.u32 %s1, 4
      %s27 = int_to_ptr.hbm [resolvable:$true] %s26
      %29 = dma.hbm_to_smem %s27, 16, [#allocation6], [#allocation7]
    $region9: #{tpu_custom_call.1} parent=1 // pred_fallthru
      _
    // Predicated region
    $region10: #{tpu_custom_call.1} parent=1 // pred_check
      _
    $region11: #{tpu_custom_call.1} parent=1 // pred_check_branch
      %31 = sbr.rel (0) target = $region13
    $region12: #{tpu_custom_call.1} parent=1 // pred_region
      %33 = vsyncadd [#allocation3], 0
      %s34 = sshll.u32 %s2, 4
      %s35 = int_to_ptr.hbm [resolvable:$true] %s34
      %s36 = sshll.u32 [#allocation8], 4
      %s37 = int_to_ptr.vmem [resolvable:$true] %s36
      %42 = dma.hbm_to_vmem [thread:$0]  %s35, 384, %s37, [#allocation3], 128, 128, 8
    $region13: #{tpu_custom_call.1} parent=1 // pred_fallthru
      _
    // Predicated region
    $region14: #{tpu_custom_call.1} parent=1 // pred_check
      _
    $region15: #{tpu_custom_call.1} parent=1 // pred_check_branch
      %44 = sbr.rel (0) target = $region17
    $region16: #{tpu_custom_call.1} parent=1 // pred_region
      %46 = dma.done [#allocation5], 16
    $region17: #{tpu_custom_call.1} parent=1 // pred_fallthru
      _
    // Predicated region
    $region18: #{tpu_custom_call.1} parent=1 // pred_check
      _
    $region19: #{tpu_custom_call.1} parent=1 // pred_check_branch
      %48 = sbr.rel (0) target = $region21
    $region20: #{tpu_custom_call.1} parent=1 // pred_region
      %50 = dma.done [#allocation7], 16
    $region21: #{tpu_custom_call.1} parent=1 // pred_fallthru
      _
    // Predicated region
    $region22: #{tpu_custom_call.1} parent=1 // pred_check
      _
    $region23: #{tpu_custom_call.1} parent=1 // pred_check_branch
      %52 = sbr.rel (0) target = $region25
    $region24: #{tpu_custom_call.1} parent=1 // pred_region
      %54 = dma.done [#allocation3], 384
    $region25: #{tpu_custom_call.1} parent=1 // pred_fallthru
      _
    %55 = sfence
    %v56 = vld [vmem:[#allocation8] sm:$0xff]
    %v57 = vld [vmem:[#allocation8 + $0x8] sm:$0xff]
    %v58 = vld [vmem:[#allocation8 + $0x10] sm:$0xff]
    %s59 = sld [smem:[#allocation2]]
    %v60 = vstv %s59
    %v61 = vmul.f32 %v56, %v60
    %v62 = vmul.f32 %v57, %v60
    %v63 = vmul.f32 %v58, %v60
    %s64 = sld [smem:[#allocation6]]
    %v65 = vstv %s64
    %v66 = vadd.f32 %v61, %v65
    %v67 = vadd.f32 %v62, %v65
    %v68 = vadd.f32 %v63, %v65
    %69 = vst [vmem:[#allocation9] sm:$0xff] %v66
    %70 = vst [vmem:[#allocation9 + $0x8] sm:$0xff] %v67
    %71 = vst [vmem:[#allocation9 + $0x10] sm:$0xff] %v68
    %s72 = sld [smem:[#allocation2 + $0x1]]
    %v73 = vstv %s72
    %v74 = vmul.f32 %v56, %v73
    %v75 = vmul.f32 %v57, %v73
    %v76 = vmul.f32 %v58, %v73
    %s77 = sld [smem:[#allocation6 + $0x1]]
    %v78 = vstv %s77
    %v79 = vadd.f32 %v74, %v78
    %v80 = vadd.f32 %v75, %v78
    %v81 = vadd.f32 %v76, %v78
    %s82 = scalar_lea.vmem [#allocation9], 24
    %83 = vst [vmem:[%s82] sm:$0xff] %v79
    %84 = vst [vmem:[%s82 + $0x8] sm:$0xff] %v80
    %85 = vst [vmem:[%s82 + $0x10] sm:$0xff] %v81
    // Predicated region
    $region26: #{tpu_custom_call.1} parent=1 // pred_check
      _
    $region27: #{tpu_custom_call.1} parent=1 // pred_check_branch
      %87 = sbr.rel (0) target = $region29
    $region28: #{tpu_custom_call.1} parent=1 // pred_region
      %89 = vsyncadd [#allocation4], 0
      %s90 = sshll.u32 [#allocation9], 4
      %s91 = int_to_ptr.vmem [resolvable:$true] %s90
      %s92 = sshll.u32 %s3, 4
      %s93 = int_to_ptr.hbm [resolvable:$true] %s92
      %98 = dma.vmem_to_hbm [thread:$0]  %s91, 768, %s93, [#allocation4], 128, 128, 8
    $region29: #{tpu_custom_call.1} parent=1 // pred_fallthru
      _
    // Predicated region
    $region30: #{tpu_custom_call.1} parent=1 // pred_check
      _
    $region31: #{tpu_custom_call.1} parent=1 // pred_check_branch
      %100 = sbr.rel (0) target = $region33
    $region32: #{tpu_custom_call.1} parent=1 // pred_region
      %102 = dma.done [#allocation4], 768
    $region33: #{tpu_custom_call.1} parent=1 // pred_fallthru
      _
    %103 = vsyncpa [#allocation3], 1
    %104 = vsyncpa [#allocation4], 1
    %105 = vsyncpa [#allocation5], 1
    %106 = vsyncpa [#allocation7], 1

</llo_original>
